<compile_context>
chip_gen: v7x
topology: tpu7x:2x2x1
jax: 0.10.0
libtpu: 0.0.40
codegen_flags: <defaults>
</compile_context>

<pallas_src>
import math
import functools

import jax
import jax.numpy as jnp
from jax import lax
from jax.experimental import pallas as pl
from jax.experimental.pallas import tpu as pltpu


# ---------------------------------------------------------------------------
# tiling / VMEM helpers
# ---------------------------------------------------------------------------
_MIB = 1024 * 1024
_TN_PREFS = (512, 256, 128)
_TK_PREFS = (512, 256, 128)
_PROJ_VMEM_BUDGET = 36 * _MIB    # working-set target: safe on v7x (64 MiB physical)
_ATTN_VMEM_BUDGET = 36 * _MIB
_FLASH_MIN_SK = 512              # kv-tiled online softmax above this key length


def _pick_tile(dim, prefs):
    """Largest preferred tile that evenly divides `dim`; else the full extent."""
    for p in prefs:
        if dim >= p and dim % p == 0:
            return p
    return dim


def _tm_prefs(dtype):
    # Sub-32-bit dtypes pack rows along sublanes: keep tm >= 16 so output stores are
    # full native (16,128) tiles instead of masked half tiles.
    if jnp.dtype(dtype).itemsize < 4:
        return (512, 256, 128, 64, 32, 16)
    return (512, 256, 128, 64, 32, 16, 8)


def _vmem_limit(working_set_bytes):
    """Explicit scoped-VMEM limit from the computed working set, with headroom,
    clamped to a range safe on v5e/v6e (128 MiB phys) and v7x (64 MiB phys)."""
    return int(min(max(working_set_bytes * 3 // 2, 32 * _MIB), 56 * _MIB))


def _heads_per_block(h, d_k, d_model):
    """Heads packed per attention grid step so the block lane width is a multiple of
    128 (or the full d_model)."""
    g = min(h, max(1, 128 // d_k))
    while h % g:
        g -= 1
    if (g * d_k) % 128 == 0 or g * d_k == d_model:
        return g
    # Awkward d_k (e.g. 96): pick the SMALLEST lane-aligned head group instead of
    # collapsing to the full d_model (keeps the head-group grid axis for megacore and
    # bounds per-step VMEM).
    for cand in range(1, h + 1):
        if h % cand == 0 and (cand * d_k) % 128 == 0:
            return cand
    return h  # full d_model block (always a legal block width)


def _proj_footprint(tm, tn, tk, isz, n_streams):
    # double-buffered x / weight / bias / output blocks + f32 accumulators
    return (2 * tm * tk * isz
            + 2 * n_streams * tk * tn * isz
            + 2 * n_streams * tn * isz
            + 2 * n_streams * tm * tn * isz
            + n_streams * tm * tn * 4)


def _proj_tiles(M, Din, Dout, dtype, n_streams):
    isz = jnp.dtype(dtype).itemsize
    tm = _pick_tile(M, _tm_prefs(dtype))
    tn = _pick_tile(Dout, _TN_PREFS)
    tk = _pick_tile(Din, _TK_PREFS)
    # Shrink until the double-buffered working set fits the budget (halving a tile
    # that is a multiple of 256 keeps 128-lane alignment and divisibility).
    while _proj_footprint(tm, tn, tk, isz, n_streams) > _PROJ_VMEM_BUDGET:
        if tk % 256 == 0:
            tk //= 2
        elif tn % 256 == 0:
            tn //= 2
        elif tm % 16 == 0 and tm > 16:
            tm //= 2
        else:
            break
    return tm, tn, tk, _proj_footprint(tm, tn, tk, isz, n_streams)


# ---------------------------------------------------------------------------
# Kernel 1: tiled fused Linear + ReLU   (relu(x @ W + b))
# ---------------------------------------------------------------------------
def _linear_relu_kernel(x_ref, w_ref, b_ref, o_ref, acc_ref):
    @pl.when(pl.program_id(2) == 0)
    def _():
        acc_ref[...] = jnp.zeros_like(acc_ref)

    acc_ref[...] += jnp.dot(x_ref[...], w_ref[...],
                            preferred_element_type=jnp.float32)

    @pl.when(pl.program_id(2) == pl.num_programs(2) - 1)
    def _():
        o_ref[...] = jnp.maximum(acc_ref[...] + b_ref[...], 0.0).astype(o_ref.dtype)


def linear_relu(x, w_t, b):
    """x: (M, Din), w_t: (Din, Dout) (already transposed), b: (Dout,)."""
    M, Din = x.shape
    Dout = w_t.shape[1]
    tm, tn, tk, foot = _proj_tiles(M, Din, Dout, x.dtype, n_streams=1)
    b2 = b.reshape(1, Dout)
    isz = jnp.dtype(x.dtype).itemsize
    cost = pl.CostEstimate(
        flops=2 * M * Din * Dout,
        transcendentals=0,
        bytes_accessed=isz * (M * Din + Din * Dout + Dout + M * Dout))
    return pl.pallas_call(
        _linear_relu_kernel,
        out_shape=jax.ShapeDtypeStruct((M, Dout), x.dtype),
        grid=(M // tm, Dout // tn, Din // tk),
        in_specs=[
            pl.BlockSpec((tm, tk), lambda i, j, k: (i, k)),
            pl.BlockSpec((tk, tn), lambda i, j, k: (k, j)),
            pl.BlockSpec((1, tn), lambda i, j, k: (0, j)),
        ],
        out_specs=pl.BlockSpec((tm, tn), lambda i, j, k: (i, j)),
        scratch_shapes=[pltpu.VMEM((tm, tn), jnp.float32)],
        compiler_params=pltpu.CompilerParams(
            dimension_semantics=("parallel", "parallel", "arbitrary"),
            vmem_limit_bytes=_vmem_limit(foot)),
        cost_estimate=cost,
    )(x, w_t, b2)


# ---------------------------------------------------------------------------
# Kernel 2: fused Q/K/V projection (one activation read, three weight streams,
#           three outputs) — used when query is key is value (self-attention).
# ---------------------------------------------------------------------------
def _qkv_proj_kernel(x_ref, wq_ref, wk_ref, wv_ref, bq_ref, bk_ref, bv_ref,
                     q_ref, k_ref, v_ref, qacc, kacc, vacc):
    @pl.when(pl.program_id(2) == 0)
    def _():
        qacc[...] = jnp.zeros_like(qacc)
        kacc[...] = jnp.zeros_like(kacc)
        vacc[...] = jnp.zeros_like(vacc)

    x = x_ref[...]
    qacc[...] += jnp.dot(x, wq_ref[...], preferred_element_type=jnp.float32)
    kacc[...] += jnp.dot(x, wk_ref[...], preferred_element_type=jnp.float32)
    vacc[...] += jnp.dot(x, wv_ref[...], preferred_element_type=jnp.float32)

    @pl.when(pl.program_id(2) == pl.num_programs(2) - 1)
    def _():
        q_ref[...] = jnp.maximum(qacc[...] + bq_ref[...], 0.0).astype(q_ref.dtype)
        k_ref[...] = jnp.maximum(kacc[...] + bk_ref[...], 0.0).astype(k_ref.dtype)
        v_ref[...] = jnp.maximum(vacc[...] + bv_ref[...], 0.0).astype(v_ref.dtype)


def qkv_proj_fused(x, wq_t, bq, wk_t, bk, wv_t, bv):
    """x: (M, D); three (D, D) weights + (D,) biases -> (q, k, v) each (M, D)."""
    M, Din = x.shape
    Dout = wq_t.shape[1]
    tm, tn, tk, foot = _proj_tiles(M, Din, Dout, x.dtype, n_streams=3)
    isz = jnp.dtype(x.dtype).itemsize
    cost = pl.CostEstimate(
        flops=6 * M * Din * Dout,
        transcendentals=0,
        bytes_accessed=isz * (M * Din + 3 * Din * Dout + 3 * Dout + 3 * M * Dout))
    w_spec = pl.BlockSpec((tk, tn), lambda i, j, k: (k, j))
    b_spec = pl.BlockSpec((1, tn), lambda i, j, k: (0, j))
    o_spec = pl.BlockSpec((tm, tn), lambda i, j, k: (i, j))
    out_sds = jax.ShapeDtypeStruct((M, Dout), x.dtype)
    return pl.pallas_call(
        _qkv_proj_kernel,
        out_shape=(out_sds, out_sds, out_sds),
        grid=(M // tm, Dout // tn, Din // tk),
        in_specs=[
            pl.BlockSpec((tm, tk), lambda i, j, k: (i, k)),
            w_spec, w_spec, w_spec,
            b_spec, b_spec, b_spec,
        ],
        out_specs=(o_spec, o_spec, o_spec),
        scratch_shapes=[
            pltpu.VMEM((tm, tn), jnp.float32),
            pltpu.VMEM((tm, tn), jnp.float32),
            pltpu.VMEM((tm, tn), jnp.float32),
        ],
        compiler_params=pltpu.CompilerParams(
            dimension_semantics=("parallel", "parallel", "arbitrary"),
            vmem_limit_bytes=_vmem_limit(foot)),
        cost_estimate=cost,
    )(x, wq_t, wk_t, wv_t, bq.reshape(1, Dout), bk.reshape(1, Dout), bv.reshape(1, Dout))


# ---------------------------------------------------------------------------
# Kernel 3a: scaled dot-product attention (short Sk): whole-Sk K/V block, tiled
#            query axis, G heads per grid step indexed directly on the lane axis.
# ---------------------------------------------------------------------------
def _attention_kernel(q_ref, k_ref, v_ref, o_ref, *, G, d_k, scale, exp_dtype):
    for g in range(G):                                   # unrolled; G is small
        lo = g * d_k
        q = q_ref[0, :, lo:lo + d_k] * scale             # (tq, d_k); scale folded into q
        k = k_ref[0, :, lo:lo + d_k]                     # (Sk, d_k)
        v = v_ref[0, :, lo:lo + d_k]
        # contract last axes directly; no k transpose materialization
        s = lax.dot_general(q, k, (((1,), (1,)), ((), ())),
                            preferred_element_type=jnp.float32)      # (tq, Sk)
        m = jnp.max(s, axis=-1, keepdims=True)
        p = jnp.exp((s - m).astype(exp_dtype))           # bf16 EUP path for bf16 inputs
        l = jnp.sum(p.astype(jnp.float32), axis=-1, keepdims=True)
        out = jnp.dot(p.astype(v.dtype), v,
                      preferred_element_type=jnp.float32)            # (tq, d_k)
        # normalize AFTER the PV matmul: tq*d_k multiplies instead of tq*Sk
        out = out * pl.reciprocal(l, approx=True)
        # per-head store (no lane concat, no extra relayout epilogue)
        o_ref[0, :, lo:lo + d_k] = out.astype(o_ref.dtype)


# ---------------------------------------------------------------------------
# Kernel 3b: kv-tiled online-softmax ("flash") attention for long Sk.
#            Running m / l / acc live in VMEM scratch; kv axis is "arbitrary".
# ---------------------------------------------------------------------------
def _flash_attention_kernel(q_ref, k_ref, v_ref, o_ref, m_sc, l_sc, acc_sc,
                            *, G, d_k, scale, exp_dtype):
    j = pl.program_id(3)

    @pl.when(j == 0)
    def _():
        m_sc[...] = jnp.full_like(m_sc, -jnp.inf)
        l_sc[...] = jnp.zeros_like(l_sc)
        acc_sc[...] = jnp.zeros_like(acc_sc)

    for g in range(G):                                   # unrolled; G is small
        lo = g * d_k
        q = q_ref[0, :, lo:lo + d_k] * scale             # (tq, d_k)
        k = k_ref[0, :, lo:lo + d_k]                     # (tkv, d_k)
        v = v_ref[0, :, lo:lo + d_k]
        s = lax.dot_general(q, k, (((1,), (1,)), ((), ())),
                            preferred_element_type=jnp.float32)      # (tq, tkv)
        m_prev = m_sc[:, g:g + 1]
        m_new = jnp.maximum(m_prev, jnp.max(s, axis=-1, keepdims=True))
        alpha = jnp.exp(m_prev - m_new)                  # (tq, 1) f32
        p = jnp.exp((s - m_new).astype(exp_dtype))
        l_sc[:, g:g + 1] = alpha * l_sc[:, g:g + 1] + \
            jnp.sum(p.astype(jnp.float32), axis=-1, keepdims=True)
        pv = jnp.dot(p.astype(v.dtype), v,
                     preferred_element_type=jnp.float32)             # (tq, d_k)
        acc_sc[:, lo:lo + d_k] = alpha * acc_sc[:, lo:lo + d_k] + pv
        m_sc[:, g:g + 1] = m_new

    @pl.when(j == pl.num_programs(3) - 1)
    def _():
        for g in range(G):
            lo = g * d_k
            inv = pl.reciprocal(l_sc[:, g:g + 1], approx=True)
            o_ref[0, :, lo:lo + d_k] = (acc_sc[:, lo:lo + d_k] * inv).astype(o_ref.dtype)


def sdp_attention(q, k, v, *, h, d_k):
    """q: (B, Sq, d_model), k/v: (B, Sk, d_model) with each head's d_k slice contiguous
    on the lane axis. Returns (B, Sq, d_model) in the same head layout."""
    B, Sq, d_model = q.shape
    Sk = k.shape[1]
    dt = q.dtype
    isz = jnp.dtype(dt).itemsize
    G = _heads_per_block(h, d_k, d_model)
    n_grp = h // G
    blk = G * d_k
    scale = 1.0 / math.sqrt(d_k)
    # bf16 exp uses the bf16 EUP path on v6e/v7x; pass f32 inputs on v5e.
    exp_dtype = jnp.bfloat16 if jnp.dtype(dt) == jnp.dtype(jnp.bfloat16) else jnp.float32

    flops = 4 * B * h * Sq * Sk * d_k
    trans = B * h * Sq * Sk

    use_flash = Sk >= _FLASH_MIN_SK
    tkv = _pick_tile(Sk, (256, 128)) if use_flash else Sk
    if tkv == Sk:
        use_flash = False            # no clean kv divisor -> whole-Sk path

    if not use_flash:
        # whole-Sk K/V blocks; query axis tiled so intermediates are tq x Sk.
        tq = _pick_tile(Sq, (512, 256, 128))

        def footprint(t):
            blocks = 2 * (2 * t * blk + 2 * Sk * blk) * isz   # double-buffered q/o + k/v
            interm = 3 * t * Sk * 4                           # scores/exp live per head
            return blocks + interm

        while footprint(tq) > _ATTN_VMEM_BUDGET and tq % 16 == 0 and tq > 16:
            tq //= 2

        kern = functools.partial(_attention_kernel, G=G, d_k=d_k, scale=scale,
                                 exp_dtype=exp_dtype)
        cost = pl.CostEstimate(
            flops=flops, transcendentals=trans,
            bytes_accessed=isz * (2 * B * Sq * d_model + 2 * B * Sk * d_model))
        return pl.pallas_call(
            kern,
            out_shape=jax.ShapeDtypeStruct((B, Sq, d_model), dt),
            grid=(B, n_grp, Sq // tq),
            in_specs=[
                pl.BlockSpec((1, tq, blk), lambda b, g, i: (b, i, g)),
                # k/v block index ignores the q-tile axis -> no re-DMA across q tiles
                pl.BlockSpec((1, Sk, blk), lambda b, g, i: (b, 0, g)),
                pl.BlockSpec((1, Sk, blk), lambda b, g, i: (b, 0, g)),
            ],
            out_specs=pl.BlockSpec((1, tq, blk), lambda b, g, i: (b, i, g)),
            compiler_params=pltpu.CompilerParams(
                dimension_semantics=("parallel", "parallel", "parallel"),
                vmem_limit_bytes=_vmem_limit(footprint(tq))),
            cost_estimate=cost,
        )(q, k, v)

    # ---- flash path: VMEM bounded at O(tq * tkv) regardless of Sk ----
    tq = _pick_tile(Sq, (256, 128))
    foot = (2 * (2 * tq * blk + 2 * tkv * blk) * isz      # double-buffered blocks
            + 2 * tq * 128 * 4 + tq * blk * 4             # m/l/acc scratch (lane-padded)
            + 3 * tq * tkv * 4)                           # per-head s/p intermediates
    kern = functools.partial(_flash_attention_kernel, G=G, d_k=d_k, scale=scale,
                             exp_dtype=exp_dtype)
    cost = pl.CostEstimate(
        flops=flops, transcendentals=trans,
        bytes_accessed=isz * (2 * B * Sq * d_model
                              + 2 * B * Sk * d_model * max(1, Sq // tq)))
    return pl.pallas_call(
        kern,
        out_shape=jax.ShapeDtypeStruct((B, Sq, d_model), dt),
        grid=(B, n_grp, Sq // tq, Sk // tkv),
        in_specs=[
            pl.BlockSpec((1, tq, blk), lambda b, g, i, j: (b, i, g)),
            pl.BlockSpec((1, tkv, blk), lambda b, g, i, j: (b, j, g)),
            pl.BlockSpec((1, tkv, blk), lambda b, g, i, j: (b, j, g)),
        ],
        out_specs=pl.BlockSpec((1, tq, blk), lambda b, g, i, j: (b, i, g)),
        scratch_shapes=[
            pltpu.VMEM((tq, G), jnp.float32),     # running max per head
            pltpu.VMEM((tq, G), jnp.float32),     # running denominator per head
            pltpu.VMEM((tq, blk), jnp.float32),   # running PV accumulator
        ],
        compiler_params=pltpu.CompilerParams(
            dimension_semantics=("parallel", "parallel", "parallel", "arbitrary"),
            vmem_limit_bytes=_vmem_limit(foot)),
        cost_estimate=cost,
    )(q, k, v)


# ---------------------------------------------------------------------------
# MultiHeadedAttention forward (glue in plain JAX, hot paths in Pallas)
# ---------------------------------------------------------------------------
def multi_headed_attention(query, key, value, params, h):
    """params: 4 x (w_t, b); w_t is (in, out) (PyTorch weight transposed)."""
    B, Sq, d_model = query.shape
    Sk = key.shape[1]
    assert d_model % h == 0
    d_k = d_model // h
    (wq, bq), (wk, bk), (wv, bv), (wo, bo) = params

    if (query is key) and (key is value):
        # self-attention: fused projection reads the activations once.
        x2 = query.reshape(B * Sq, d_model)
        q2, k2, v2 = qkv_proj_fused(x2, wq, bq, wk, bk, wv, bv)
        k3 = k2.reshape(B, Sq, d_model)
        v3 = v2.reshape(B, Sq, d_model)
    else:
        q2 = linear_relu(query.reshape(B * Sq, d_model), wq, bq)
        k3 = linear_relu(key.reshape(B * Sk, d_model), wk, bk).reshape(B, Sk, d_model)
        v3 = linear_relu(value.reshape(B * Sk, d_model), wv, bv).reshape(B, Sk, d_model)
    q3 = q2.reshape(B, Sq, d_model)

    # Heads are sliced on the lane axis inside the attention kernel's BlockSpecs;
    # this replaces the view/transpose/contiguous round-trips of the PyTorch code
    # with zero extra HBM passes.
    attn = sdp_attention(q3, k3, v3, h=h, d_k=d_k)        # (B, Sq, d_model)

    out = linear_relu(attn.reshape(B * Sq, d_model), wo, bo)
    return out.reshape(B, Sq, d_model)


# ---------------------------------------------------------------------------
# Pure-JAX reference for a sanity check
# ---------------------------------------------------------------------------
def reference_mha(query, key, value, params, h):
    B, Sq, d_model = query.shape
    Sk = key.shape[1]
    d_k = d_model // h

    def lin(x, p):
        w_t, b = p
        return jnp.maximum(x @ w_t + b, 0.0)

    q = lin(query, params[0]).reshape(B, Sq, h, d_k).transpose(0, 2, 1, 3)
    k = lin(key, params[1]).reshape(B, Sk, h, d_k).transpose(0, 2, 1, 3)
    v = lin(value, params[2]).reshape(B, Sk, h, d_k).transpose(0, 2, 1, 3)
    scores = jnp.einsum("bhqd,bhkd->bhqk", q, k) / math.sqrt(d_k)
    p = jax.nn.softmax(scores, axis=-1)
    x = jnp.einsum("bhqk,bhkd->bhqd", p, v)
    x = x.transpose(0, 2, 1, 3).reshape(B, Sq, d_model)
    return lin(x, params[3])


if __name__ == "__main__":
    def make_params(key, D, dtype):
        ks = jax.random.split(key, 8)
        params = []
        for i in range(4):
            w = (jax.random.normal(ks[i], (D, D), jnp.float32) * 0.1).astype(dtype)
            b = (jax.random.normal(ks[4 + i], (D,), jnp.float32) * 0.1).astype(dtype)
            params.append((w, b))
        return params

    def run_case(key, *, B, Sq, Sk, H, D, dtype, self_attn, atol, rtol):
        kp, kq, kk, kv = jax.random.split(key, 4)
        params = make_params(kp, D, dtype)
        q = jax.random.normal(kq, (B, Sq, D), jnp.float32).astype(dtype)
        if self_attn:
            k = v = q
        else:
            k = jax.random.normal(kk, (B, Sk, D), jnp.float32).astype(dtype)
            v = jax.random.normal(kv, (B, Sk, D), jnp.float32).astype(dtype)

        out = jax.block_until_ready(multi_headed_attention(q, k, v, params, H))
        ref = reference_mha(
            q.astype(jnp.float32), k.astype(jnp.float32), v.astype(jnp.float32),
            [(w.astype(jnp.float32), b.astype(jnp.float32)) for w, b in params], H)
        assert out.shape == (B, Sq, D), out.shape
        err = jnp.max(jnp.abs(out.astype(jnp.float32) - ref))
        assert jnp.allclose(out.astype(jnp.float32), ref, atol=atol, rtol=rtol), \
            f"mismatch vs reference (max abs err {err})"

    root = jax.random.PRNGKey(0)
    k1, k2, k3, k4, k5 = jax.random.split(root, 5)

    # small shapes: batch=2, seq=8, heads=4, d_model=32 (d_k=8, all heads per block)
    run_case(k1, B=2, Sq=8, Sk=8, H=4, D=32, dtype=jnp.float32,
             self_attn=True, atol=1e-2, rtol=1e-2)
    # cross-attention with a different key length (separate projection kernels)
    run_case(k2, B=2, Sq=8, Sk=16, H=4, D=32, dtype=jnp.float32,
             self_attn=False, atol=1e-2, rtol=1e-2)
    # d_k=64: two heads per 128-lane-wide block
    run_case(k3, B=2, Sq=8, Sk=8, H=4, D=256, dtype=jnp.float32,
             self_attn=True, atol=1e-2, rtol=1e-2)
    # long sequence -> kv-tiled online-softmax (flash) path, f32
    run_case(k4, B=1, Sq=512, Sk=512, H=2, D=128, dtype=jnp.float32,
             self_attn=True, atol=1e-2, rtol=1e-2)
    # same, bf16 end-to-end (v6e/v7x MXU/EUP path); looser tolerance vs f32 reference
    run_case(k5, B=1, Sq=512, Sk=512, H=2, D=128, dtype=jnp.bfloat16,
             self_attn=True, atol=1e-1, rtol=1e-1)

    print("KERNEL_OK")
</pallas_src>

<mosaic_0001>
module attributes {stable_mosaic.version = 11 : i64} {
  func.func @_qkv_proj_kernel(%arg0: i32, %arg1: i32, %arg2: i32, %arg3: memref<16x32xf32, #tpu.memory_space<vmem>>, %arg4: memref<32x32xf32, #tpu.memory_space<vmem>>, %arg5: memref<32x32xf32, #tpu.memory_space<vmem>>, %arg6: memref<32x32xf32, #tpu.memory_space<vmem>>, %arg7: memref<1x32xf32, #tpu.memory_space<vmem>>, %arg8: memref<1x32xf32, #tpu.memory_space<vmem>>, %arg9: memref<1x32xf32, #tpu.memory_space<vmem>>, %arg10: memref<16x32xf32, #tpu.memory_space<vmem>>, %arg11: memref<16x32xf32, #tpu.memory_space<vmem>>, %arg12: memref<16x32xf32, #tpu.memory_space<vmem>>, %arg13: memref<16x32xf32, #tpu.memory_space<vmem>>, %arg14: memref<16x32xf32, #tpu.memory_space<vmem>>, %arg15: memref<16x32xf32, #tpu.memory_space<vmem>>) attributes {dimension_semantics = [#tpu.dimension_semantics<parallel>, #tpu.dimension_semantics<parallel>, #tpu.dimension_semantics<arbitrary>], iteration_bounds = array<i64: 1, 1, 1>, scalar_prefetch = 0 : i64, scratch_operands = 3 : i64, tpu.core_type = #tpu.core_type<tc>, window_params = [{transform_indices = @transform_0, window_bounds = array<i64: 16, 32>}, {transform_indices = @transform_1, window_bounds = array<i64: 32, 32>}, {transform_indices = @transform_2, window_bounds = array<i64: 32, 32>}, {transform_indices = @transform_3, window_bounds = array<i64: 32, 32>}, {transform_indices = @transform_4, window_bounds = array<i64: 1, 32>}, {transform_indices = @transform_5, window_bounds = array<i64: 1, 32>}, {transform_indices = @transform_6, window_bounds = array<i64: 1, 32>}, {transform_indices = @transform_7, window_bounds = array<i64: 16, 32>}, {transform_indices = @transform_8, window_bounds = array<i64: 16, 32>}, {transform_indices = @transform_9, window_bounds = array<i64: 16, 32>}]} {
    %c0_i32 = arith.constant 0 : i32
    %0 = arith.cmpi eq, %arg2, %c0_i32 : i32
    %1 = arith.extui %0 : i1 to i32
    %c0_i32_0 = arith.constant 0 : i32
    %2 = arith.cmpi ne, %1, %c0_i32_0 : i32
    scf.if %2 {
      %cst_24 = arith.constant 0.000000e+00 : f32
      %22 = vector.broadcast %cst_24 : f32 to vector<16x32xf32>
      %c0_25 = arith.constant 0 : index
      %c0_26 = arith.constant 0 : index
      %23 = vector.load %arg13[%c0_25, %c0_26] : memref<16x32xf32, #tpu.memory_space<vmem>>, vector<16x32xf32>
      tpu.vector_store %arg13[%c0_25, %c0_26], %22 {strides = array<i32>} : memref<16x32xf32, #tpu.memory_space<vmem>>, vector<16x32xf32>,
      %cst_27 = arith.constant 0.000000e+00 : f32
      %24 = vector.broadcast %cst_27 : f32 to vector<16x32xf32>
      %c0_28 = arith.constant 0 : index
      %c0_29 = arith.constant 0 : index
      %25 = vector.load %arg14[%c0_28, %c0_29] : memref<16x32xf32, #tpu.memory_space<vmem>>, vector<16x32xf32>
      tpu.vector_store %arg14[%c0_28, %c0_29], %24 {strides = array<i32>} : memref<16x32xf32, #tpu.memory_space<vmem>>, vector<16x32xf32>,
      %cst_30 = arith.constant 0.000000e+00 : f32
      %26 = vector.broadcast %cst_30 : f32 to vector<16x32xf32>
      %c0_31 = arith.constant 0 : index
      %c0_32 = arith.constant 0 : index
      %27 = vector.load %arg15[%c0_31, %c0_32] : memref<16x32xf32, #tpu.memory_space<vmem>>, vector<16x32xf32>
      tpu.vector_store %arg15[%c0_31, %c0_32], %26 {strides = array<i32>} : memref<16x32xf32, #tpu.memory_space<vmem>>, vector<16x32xf32>,
    } else {
    }
    %c0 = arith.constant 0 : index
    %c0_1 = arith.constant 0 : index
    %3 = vector.load %arg3[%c0, %c0_1] : memref<16x32xf32, #tpu.memory_space<vmem>>, vector<16x32xf32>
    %c0_2 = arith.constant 0 : index
    %c0_3 = arith.constant 0 : index
    %4 = vector.load %arg13[%c0_2, %c0_3] : memref<16x32xf32, #tpu.memory_space<vmem>>, vector<16x32xf32>
    %c0_4 = arith.constant 0 : index
    %c0_5 = arith.constant 0 : index
    %5 = vector.load %arg4[%c0_4, %c0_5] : memref<32x32xf32, #tpu.memory_space<vmem>>, vector<32x32xf32>
    %cst = arith.constant dense<0.000000e+00> : vector<16x32xf32>
    %6 = tpu.matmul %3, %5, %cst {dimension_numbers = #tpu.dot_dimension_numbers<[1], [0], [0], [1], [0, 0, 1, 1], [], []>} : vector<16x32xf32>, vector<32x32xf32>, vector<16x32xf32> -> vector<16x32xf32>
    %7 = arith.addf %4, %6 : vector<16x32xf32>
    %c0_6 = arith.constant 0 : index
    %c0_7 = arith.constant 0 : index
    %8 = vector.load %arg13[%c0_6, %c0_7] : memref<16x32xf32, #tpu.memory_space<vmem>>, vector<16x32xf32>
    tpu.vector_store %arg13[%c0_6, %c0_7], %7 {strides = array<i32>} : memref<16x32xf32, #tpu.memory_space<vmem>>, vector<16x32xf32>,
    %c0_8 = arith.constant 0 : index
    %c0_9 = arith.constant 0 : index
    %9 = vector.load %arg14[%c0_8, %c0_9] : memref<16x32xf32, #tpu.memory_space<vmem>>, vector<16x32xf32>
    %c0_10 = arith.constant 0 : index
    %c0_11 = arith.constant 0 : index
    %10 = vector.load %arg5[%c0_10, %c0_11] : memref<32x32xf32, #tpu.memory_space<vmem>>, vector<32x32xf32>
    %cst_12 = arith.constant dense<0.000000e+00> : vector<16x32xf32>
    %11 = tpu.matmul %3, %10, %cst_12 {dimension_numbers = #tpu.dot_dimension_numbers<[1], [0], [0], [1], [0, 0, 1, 1], [], []>} : vector<16x32xf32>, vector<32x32xf32>, vector<16x32xf32> -> vector<16x32xf32>
    %12 = arith.addf %9, %11 : vector<16x32xf32>
    %c0_13 = arith.constant 0 : index
    %c0_14 = arith.constant 0 : index
    %13 = vector.load %arg14[%c0_13, %c0_14] : memref<16x32xf32, #tpu.memory_space<vmem>>, vector<16x32xf32>
    tpu.vector_store %arg14[%c0_13, %c0_14], %12 {strides = array<i32>} : memref<16x32xf32, #tpu.memory_space<vmem>>, vector<16x32xf32>,
    %c0_15 = arith.constant 0 : index
    %c0_16 = arith.constant 0 : index
    %14 = vector.load %arg15[%c0_15, %c0_16] : memref<16x32xf32, #tpu.memory_space<vmem>>, vector<16x32xf32>
    %c0_17 = arith.constant 0 : index
    %c0_18 = arith.constant 0 : index
    %15 = vector.load %arg6[%c0_17, %c0_18] : memref<32x32xf32, #tpu.memory_space<vmem>>, vector<32x32xf32>
    %cst_19 = arith.constant dense<0.000000e+00> : vector<16x32xf32>
    %16 = tpu.matmul %3, %15, %cst_19 {dimension_numbers = #tpu.dot_dimension_numbers<[1], [0], [0], [1], [0, 0, 1, 1], [], []>} : vector<16x32xf32>, vector<32x32xf32>, vector<16x32xf32> -> vector<16x32xf32>
    %17 = arith.addf %14, %16 : vector<16x32xf32>
    %c0_20 = arith.constant 0 : index
    %c0_21 = arith.constant 0 : index
    %18 = vector.load %arg15[%c0_20, %c0_21] : memref<16x32xf32, #tpu.memory_space<vmem>>, vector<16x32xf32>
    tpu.vector_store %arg15[%c0_20, %c0_21], %17 {strides = array<i32>} : memref<16x32xf32, #tpu.memory_space<vmem>>, vector<16x32xf32>,
    %c0_i32_22 = arith.constant 0 : i32
    %19 = arith.cmpi eq, %arg2, %c0_i32_22 : i32
    %20 = arith.extui %19 : i1 to i32
    %c0_i32_23 = arith.constant 0 : i32
    %21 = arith.cmpi ne, %20, %c0_i32_23 : i32
    scf.if %21 {
      %c0_24 = arith.constant 0 : index
      %c0_25 = arith.constant 0 : index
      %22 = vector.load %arg13[%c0_24, %c0_25] : memref<16x32xf32, #tpu.memory_space<vmem>>, vector<16x32xf32>
      %c0_26 = arith.constant 0 : index
      %c0_27 = arith.constant 0 : index
      %23 = vector.load %arg7[%c0_26, %c0_27] : memref<1x32xf32, #tpu.memory_space<vmem>>, vector<1x32xf32>
      %24 = vector.broadcast %23 : vector<1x32xf32> to vector<16x32xf32>
      %25 = arith.addf %22, %24 : vector<16x32xf32>
      %cst_28 = arith.constant 0.000000e+00 : f32
      %26 = vector.broadcast %cst_28 : f32 to vector<16x32xf32>
      %27 = arith.maximumf %25, %26 : vector<16x32xf32>
      %c0_29 = arith.constant 0 : index
      %c0_30 = arith.constant 0 : index
      %28 = vector.load %arg10[%c0_29, %c0_30] : memref<16x32xf32, #tpu.memory_space<vmem>>, vector<16x32xf32>
      tpu.vector_store %arg10[%c0_29, %c0_30], %27 {strides = array<i32>} : memref<16x32xf32, #tpu.memory_space<vmem>>, vector<16x32xf32>,
      %c0_31 = arith.constant 0 : index
      %c0_32 = arith.constant 0 : index
      %29 = vector.load %arg14[%c0_31, %c0_32] : memref<16x32xf32, #tpu.memory_space<vmem>>, vector<16x32xf32>
      %c0_33 = arith.constant 0 : index
      %c0_34 = arith.constant 0 : index
      %30 = vector.load %arg8[%c0_33, %c0_34] : memref<1x32xf32, #tpu.memory_space<vmem>>, vector<1x32xf32>
      %31 = vector.broadcast %30 : vector<1x32xf32> to vector<16x32xf32>
      %32 = arith.addf %29, %31 : vector<16x32xf32>
      %cst_35 = arith.constant 0.000000e+00 : f32
      %33 = vector.broadcast %cst_35 : f32 to vector<16x32xf32>
      %34 = arith.maximumf %32, %33 : vector<16x32xf32>
      %c0_36 = arith.constant 0 : index
      %c0_37 = arith.constant 0 : index
      %35 = vector.load %arg11[%c0_36, %c0_37] : memref<16x32xf32, #tpu.memory_space<vmem>>, vector<16x32xf32>
      tpu.vector_store %arg11[%c0_36, %c0_37], %34 {strides = array<i32>} : memref<16x32xf32, #tpu.memory_space<vmem>>, vector<16x32xf32>,
      %c0_38 = arith.constant 0 : index
      %c0_39 = arith.constant 0 : index
      %36 = vector.load %arg15[%c0_38, %c0_39] : memref<16x32xf32, #tpu.memory_space<vmem>>, vector<16x32xf32>
      %c0_40 = arith.constant 0 : index
      %c0_41 = arith.constant 0 : index
      %37 = vector.load %arg9[%c0_40, %c0_41] : memref<1x32xf32, #tpu.memory_space<vmem>>, vector<1x32xf32>
      %38 = vector.broadcast %37 : vector<1x32xf32> to vector<16x32xf32>
      %39 = arith.addf %36, %38 : vector<16x32xf32>
      %cst_42 = arith.constant 0.000000e+00 : f32
      %40 = vector.broadcast %cst_42 : f32 to vector<16x32xf32>
      %41 = arith.maximumf %39, %40 : vector<16x32xf32>
      %c0_43 = arith.constant 0 : index
      %c0_44 = arith.constant 0 : index
      %42 = vector.load %arg12[%c0_43, %c0_44] : memref<16x32xf32, #tpu.memory_space<vmem>>, vector<16x32xf32>
      tpu.vector_store %arg12[%c0_43, %c0_44], %41 {strides = array<i32>} : memref<16x32xf32, #tpu.memory_space<vmem>>, vector<16x32xf32>,
    } else {
    }
    return
  }
  func.func @transform_0(%arg0: i32, %arg1: i32, %arg2: i32) -> (i32, i32) {
    %c0_i32 = arith.constant 0 : i32
    return %arg0, %arg2 : i32, i32
  }
  func.func @transform_1(%arg0: i32, %arg1: i32, %arg2: i32) -> (i32, i32) {
    %c0_i32 = arith.constant 0 : i32
    return %arg2, %arg1 : i32, i32
  }
  func.func @transform_2(%arg0: i32, %arg1: i32, %arg2: i32) -> (i32, i32) {
    %c0_i32 = arith.constant 0 : i32
    return %arg2, %arg1 : i32, i32
  }
  func.func @transform_3(%arg0: i32, %arg1: i32, %arg2: i32) -> (i32, i32) {
    %c0_i32 = arith.constant 0 : i32
    return %arg2, %arg1 : i32, i32
  }
  func.func @transform_4(%arg0: i32, %arg1: i32, %arg2: i32) -> (i32, i32) {
    %c0_i32 = arith.constant 0 : i32
    %c0_i32_0 = arith.constant 0 : i32
    return %c0_i32, %arg1 : i32, i32
  }
  func.func @transform_5(%arg0: i32, %arg1: i32, %arg2: i32) -> (i32, i32) {
    %c0_i32 = arith.constant 0 : i32
    %c0_i32_0 = arith.constant 0 : i32
    return %c0_i32, %arg1 : i32, i32
  }
  func.func @transform_6(%arg0: i32, %arg1: i32, %arg2: i32) -> (i32, i32) {
    %c0_i32 = arith.constant 0 : i32
    %c0_i32_0 = arith.constant 0 : i32
    return %c0_i32, %arg1 : i32, i32
  }
  func.func @transform_7(%arg0: i32, %arg1: i32, %arg2: i32) -> (i32, i32) {
    %c0_i32 = arith.constant 0 : i32
    return %arg0, %arg1 : i32, i32
  }
  func.func @transform_8(%arg0: i32, %arg1: i32, %arg2: i32) -> (i32, i32) {
    %c0_i32 = arith.constant 0 : i32
    return %arg0, %arg1 : i32, i32
  }
  func.func @transform_9(%arg0: i32, %arg1: i32, %arg2: i32) -> (i32, i32) {
    %c0_i32 = arith.constant 0 : i32
    return %arg0, %arg1 : i32, i32
  }
}

</mosaic_0001>

<llo_original>
// kernel: tpu_custom_call.1
$region0: #{tpu_custom_call.1}
  #allocation0 [shape = 'u32[]', space=smem, size = 0x4, offset = 0x4, fixed_abs, tag = 'smem constant byte address 0x4 - core index']
  #allocation1 [shape = 'u32[144,128]{1,0:T(1,128)}', space=vmem, size = 0x12000, scoped, tag = 'internal scratch']
  #allocation2 [shape = 'f32[16,32]{1,0:T(8,128)}', space=vmem, size = 0x2000, scoped, tag = 'scratch operand']
  #allocation3 [shape = 'f32[16,32]{1,0:T(8,128)}', space=vmem, size = 0x2000, scoped, tag = 'scratch operand']
  #allocation4 [shape = 'f32[16,32]{1,0:T(8,128)}', space=vmem, size = 0x2000, scoped, tag = 'scratch operand']
  %s0 = inlined_call_operand.hbm [shape: f32[16,32], index: 0, kind: input, shape index: {}]
  %s1 = inlined_call_operand.hbm [shape: f32[32,32], index: 1, kind: input, shape index: {}]
  %s2 = inlined_call_operand.hbm [shape: f32[32,32], index: 2, kind: input, shape index: {}]
  %s3 = inlined_call_operand.hbm [shape: f32[32,32], index: 3, kind: input, shape index: {}]
  %s4 = inlined_call_operand.vmem [shape: f32[1,32], index: 4, kind: input, shape index: {}]
  %s5 = inlined_call_operand.vmem [shape: f32[1,32], index: 5, kind: input, shape index: {}]
  %s6 = inlined_call_operand.vmem [shape: f32[1,32], index: 6, kind: input, shape index: {}]
  %s7 = inlined_call_operand.hbm [shape: f32[16,32], index: 7, kind: output, shape index: {0}]
  %s8 = inlined_call_operand.hbm [shape: f32[16,32], index: 8, kind: output, shape index: {1}]
  %s9 = inlined_call_operand.hbm [shape: f32[16,32], index: 9, kind: output, shape index: {2}]
  %10 = xla_tuple %s7, %s8, %s9
  %s11 = sld [smem:[#allocation0]]
  $region78: #{tpu_custom_call.1} parent=0
    _
  %s13 = ssub.s32 1, %s11
  %s14 = scalar_select 0, %s13, %s11
  $region1: #{tpu_custom_call.1} parent=0
    #allocation5 [shape = 'u8[8192]{0}', space=vmem, size = 0x2000, scoped, tag = 'input window, operand 0, single buffered']
    #allocation6 [shape = 's32[1]{0}', space=sflag, size = 0x4, scoped, tag = 'scoped memory for tpu_custom_call.1']
    #allocation7 [shape = 's32[1]{0}', space=sflag, size = 0x4, scoped, tag = 'scoped memory for tpu_custom_call.1']
    #allocation8 [shape = 'u8[16384]{0}', space=vmem, size = 0x4000, scoped, tag = 'input window, operand 1, single buffered']
    #allocation9 [shape = 's32[1]{0}', space=sflag, size = 0x4, scoped, tag = 'scoped memory for tpu_custom_call.1']
    #allocation10 [shape = 'u8[16384]{0}', space=vmem, size = 0x4000, scoped, tag = 'input window, operand 2, single buffered']
    #allocation11 [shape = 'u8[16384]{0}', space=vmem, size = 0x4000, scoped, tag = 'input window, operand 3, single buffered']
    #allocation12 [shape = 's32[1]{0}', space=sflag, size = 0x4, scoped, tag = 'scoped memory for tpu_custom_call.1']
    #allocation13 [shape = 'u8[8192]{0}', space=vmem, size = 0x2000, scoped, tag = 'output window, operand 0, single buffered']
    #allocation14 [shape = 'u8[8192]{0}', space=vmem, size = 0x2000, scoped, tag = 'output window, operand 1, single buffered']
    #allocation15 [shape = 's32[1]{0}', space=sflag, size = 0x4, scoped, tag = 'scoped memory for tpu_custom_call.1']
    #allocation16 [shape = 'u8[8192]{0}', space=vmem, size = 0x2000, scoped, tag = 'output window, operand 2, single buffered']
    %15 = vsyncpa [#allocation6], 0
    %16 = vsyncpa [#allocation9], 0
    %17 = vsyncpa [#allocation12], 0
    %18 = vsyncpa [#allocation7], 0
    %19 = vsyncpa [#allocation15], 0
    // Predicated region
    $region2: #{tpu_custom_call.1} parent=1 // pred_check
      _
    $region3: #{tpu_custom_call.1} parent=1 // pred_check_branch
      %21 = sbr.rel (0) target = $region5
    $region4: #{tpu_custom_call.1} parent=1 // pred_region
      %s23 = ssub.s32 256, 256
      %24 = vsyncadd [#allocation6], %s23
      %s25 = sshll.u32 [#allocation5], 4
      %s26 = int_to_ptr.vmem [resolvable:$true] %s25
      %31 = dma.hbm_to_vmem [thread:$0]  %s0, 256, %s26, [#allocation6], 128, 128, 8
    $region5: #{tpu_custom_call.1} parent=1 // pred_fallthru
      _
    // Predicated region
    $region6: #{tpu_custom_call.1} parent=1 // pred_check
      _
    $region7: #{tpu_custom_call.1} parent=1 // pred_check_branch
      %33 = sbr.rel (0) target = $region9
    $region8: #{tpu_custom_call.1} parent=1 // pred_region
      %s35 = ssub.s32 512, 512
      %36 = vsyncadd [#allocation9], %s35
      %s37 = sshll.u32 [#allocation8], 4
      %s38 = int_to_ptr.vmem [resolvable:$true] %s37
      %43 = dma.hbm_to_vmem [thread:$0]  %s1, 512, %s38, [#allocation9], 128, 128, 8
    $region9: #{tpu_custom_call.1} parent=1 // pred_fallthru
      _
    // Predicated region
    $region10: #{tpu_custom_call.1} parent=1 // pred_check
      _
    $region11: #{tpu_custom_call.1} parent=1 // pred_check_branch
      %45 = sbr.rel (0) target = $region13
    $region12: #{tpu_custom_call.1} parent=1 // pred_region
      %s47 = ssub.s32 512, 512
      %48 = vsyncadd [#allocation9], %s47
      %s49 = sshll.u32 [#allocation10], 4
      %s50 = int_to_ptr.vmem [resolvable:$true] %s49
      %55 = dma.hbm_to_vmem [thread:$0]  %s2, 512, %s50, [#allocation9], 128, 128, 8
    $region13: #{tpu_custom_call.1} parent=1 // pred_fallthru
      _
    // Predicated region
    $region14: #{tpu_custom_call.1} parent=1 // pred_check
      _
    $region15: #{tpu_custom_call.1} parent=1 // pred_check_branch
      %57 = sbr.rel (0) target = $region17
    $region16: #{tpu_custom_call.1} parent=1 // pred_region
      %s59 = ssub.s32 512, 512
      %60 = vsyncadd [#allocation12], %s59
      %s61 = sshll.u32 [#allocation11], 4
      %s62 = int_to_ptr.vmem [resolvable:$true] %s61
      %67 = dma.hbm_to_vmem [thread:$0]  %s3, 512, %s62, [#allocation12], 128, 128, 8
    $region17: #{tpu_custom_call.1} parent=1 // pred_fallthru
      _
    // Predicated region
    $region18: #{tpu_custom_call.1} parent=1 // pred_check
      _
    $region19: #{tpu_custom_call.1} parent=1 // pred_check_branch
      %69 = sbr.rel (0) target = $region21
    $region20: #{tpu_custom_call.1} parent=1 // pred_region
      _
    $region21: #{tpu_custom_call.1} parent=1 // pred_fallthru
      _
    // Predicated region
    $region22: #{tpu_custom_call.1} parent=1 // pred_check
      _
    $region23: #{tpu_custom_call.1} parent=1 // pred_check_branch
      %71 = sbr.rel (0) target = $region25
    $region24: #{tpu_custom_call.1} parent=1 // pred_region
      _
    $region25: #{tpu_custom_call.1} parent=1 // pred_fallthru
      _
    // Predicated region
    $region26: #{tpu_custom_call.1} parent=1 // pred_check
      _
    $region27: #{tpu_custom_call.1} parent=1 // pred_check_branch
      %73 = sbr.rel (0) target = $region29
    $region28: #{tpu_custom_call.1} parent=1 // pred_region
      _
    $region29: #{tpu_custom_call.1} parent=1 // pred_fallthru
      _
    // Predicated region
    $region30: #{tpu_custom_call.1} parent=1 // pred_check
      _
    $region31: #{tpu_custom_call.1} parent=1 // pred_check_branch
      %75 = sbr.rel (0) target = $region33
    $region32: #{tpu_custom_call.1} parent=1 // pred_region
      %76 = dma.done [#allocation6], 256
    $region33: #{tpu_custom_call.1} parent=1 // pred_fallthru
      _
    // Predicated region
    $region34: #{tpu_custom_call.1} parent=1 // pred_check
      _
    $region35: #{tpu_custom_call.1} parent=1 // pred_check_branch
      %78 = sbr.rel (0) target = $region37
    $region36: #{tpu_custom_call.1} parent=1 // pred_region
      %79 = dma.done [#allocation9], 512
    $region37: #{tpu_custom_call.1} parent=1 // pred_fallthru
      _
    // Predicated region
    $region38: #{tpu_custom_call.1} parent=1 // pred_check
      _
    $region39: #{tpu_custom_call.1} parent=1 // pred_check_branch
      %81 = sbr.rel (0) target = $region41
    $region40: #{tpu_custom_call.1} parent=1 // pred_region
      %82 = dma.done [#allocation9], 512
    $region41: #{tpu_custom_call.1} parent=1 // pred_fallthru
      _
    // Predicated region
    $region42: #{tpu_custom_call.1} parent=1 // pred_check
      _
    $region43: #{tpu_custom_call.1} parent=1 // pred_check_branch
      %84 = sbr.rel (0) target = $region45
    $region44: #{tpu_custom_call.1} parent=1 // pred_region
      %85 = dma.done [#allocation12], 512
    $region45: #{tpu_custom_call.1} parent=1 // pred_fallthru
      _
    %p86 = scmp.eq.s32.totalorder 0, 0
    // Predicated region
    $region46: #{tpu_custom_call.1} parent=1 // pred_check
      %p87 = pneg %p86
    $region47: #{tpu_custom_call.1} parent=1 // pred_check_branch
      %89 = sbr.rel (%p87) target = $region49
    $region48: #{tpu_custom_call.1} parent=1 // pred_region
      %vm90 = vcmask 261120
      %91 = vst.msk [vmem:[#allocation2] sm:$0xff] %vm90, 0.0
      %92 = vst.msk [vmem:[#allocation2 + $0x8] sm:$0xff] %vm90, 0.0
      %93 = vst.msk [vmem:[#allocation3] sm:$0xff] %vm90, 0.0
      %94 = vst.msk [vmem:[#allocation3 + $0x8] sm:$0xff] %vm90, 0.0
      %95 = vst.msk [vmem:[#allocation4] sm:$0xff] %vm90, 0.0
      %96 = vst.msk [vmem:[#allocation4 + $0x8] sm:$0xff] %vm90, 0.0
    $region49: #{tpu_custom_call.1} parent=1 // pred_fallthru
      _
    %v97 = vld [vmem:[#allocation5] sm:$0xff]
    %v98 = vld [vmem:[#allocation5 + $0x8] sm:$0xff]
    %v99 = vld [vmem:[#allocation2] sm:$0xff]
    %v100 = vld [vmem:[#allocation2 + $0x8] sm:$0xff]
    %v101 = vld [vmem:[#allocation8] sm:$0xff]
    %v102 = vld [vmem:[#allocation8 + $0x8] sm:$0xff]
    %v103 = vld [vmem:[#allocation8 + $0x10] sm:$0xff]
    %v104 = vld [vmem:[#allocation8 + $0x18] sm:$0xff]
    %vm105 = vcmask 261120
    %v107 = vsel %vm105, %v97, 0
    %v110 = vsel %vm105, %v98, 0
    %112 = vmatprep.subr.mxu0 0.0
    %113 = vmatpush1.msra.mxu0 %v101
    %114 = vmatprep.subr.mxu0 0.0
    %115 = vmatpush1.msra.mxu0 %v102
    %116 = vmatprep.subr.mxu0 0.0
    %117 = vmatpush1.msra.mxu0 %v103
    %118 = vmatprep.subr.mxu0 0.0
    %119 = vmatpush1.msra.mxu0 %v104
    %120 = vmatprep.subr.mxu0 0.0
    %121 = vmatpush1.msra.mxu0 0.0
    %122 = vmatprep.subr.mxu0 0.0
    %123 = vmatpush1.msra.mxu0 0.0
    %124 = vmatprep.subr.mxu0 0.0
    %125 = vmatpush1.msra.mxu0 0.0
    %126 = vmatprep.subr.mxu0 0.0
    %127 = vmatpush1.msra.mxu0 0.0
    %128 = vmatprep.subr.mxu0 0.0
    %129 = vmatpush1.msra.mxu0 0.0
    %130 = vmatprep.subr.mxu0 0.0
    %131 = vmatpush1.msra.mxu0 0.0
    %132 = vmatprep.subr.mxu0 0.0
    %133 = vmatpush1.msra.mxu0 0.0
    %134 = vmatprep.subr.mxu0 0.0
    %135 = vmatpush1.msra.mxu0 0.0
    %136 = vmatprep.subr.mxu0 0.0
    %137 = vmatpush1.msra.mxu0 0.0
    %138 = vmatprep.subr.mxu0 0.0
    %139 = vmatpush1.msra.mxu0 0.0
    %140 = vmatprep.subr.mxu0 0.0
    %141 = vmatpush1.msra.mxu0 0.0
    %142 = vmatprep.subr.mxu0 0.0
    %143 = vmatpush1.msra.mxu0 0.0
    %144 = vmatprep.subr.mxu0 0.0
    %145 = vmatpush1.msra.mxu0 0.0
    %146 = vmatprep.subr.mxu0 0.0
    %147 = vmatpush1.msra.mxu0 0.0
    %148 = vmatprep.subr.mxu0 0.0
    %149 = vmatpush1.msra.mxu0 0.0
    %150 = vmatprep.subr.mxu0 0.0
    %151 = vmatpush1.msra.mxu0 0.0
    %152 = vmatprep.subr.mxu0 0.0
    %153 = vmatpush1.msra.mxu0 0.0
    %154 = vmatprep.subr.mxu0 0.0
    %155 = vmatpush1.msra.mxu0 0.0
    %156 = vmatprep.subr.mxu0 0.0
    %157 = vmatpush1.msra.mxu0 0.0
    %158 = vmatprep.subr.mxu0 0.0
    %159 = vmatpush1.msra.mxu0 0.0
    %160 = vmatprep.subr.mxu0 0.0
    %161 = vmatpush1.msra.mxu0 0.0
    %162 = vmatprep.subr.mxu0 0.0
    %163 = vmatpush1.msra.mxu0 0.0
    %164 = vmatprep.subr.mxu0 0.0
    %165 = vmatpush1.msra.mxu0 0.0
    %166 = vmatprep.subr.mxu0 0.0
    %167 = vmatpush1.msra.mxu0 0.0
    %168 = vmatprep.subr.mxu0 0.0
    %169 = vmatpush1.msra.mxu0 0.0
    %170 = vmatprep.subr.mxu0 0.0
    %171 = vmatpush1.msra.mxu0 0.0
    %172 = vmatprep.subr.mxu0 0.0
    %173 = vmatpush1.msra.mxu0 0.0
    %174 = vmatprep.subr.mxu0 0.0
    %175 = vmatpush1.msra.mxu0 0.0
    %176 = vmatprep.mubr.f32.mxu0 0.0
    %177 = vmatmul.mubr.f32.gmra.mrb[0].mxu0 %v107
    %v178 = vpop.f32.mrb[0].mxu0
    %v179 = vadd.f32 0.0, %v178
    %v180 = vpop.f32.mrb[0].mxu0
    %181 = vmatprep.mubr.f32.mxu0 0.0
    %182 = vmatmul.mubr.f32.gmra.mrb[0].mxu0 %v110
    %v183 = vpop.f32.mrb[0].mxu0
    %v184 = vadd.f32 0.0, %v183
    %v185 = vpop.f32.mrb[0].mxu0
    %186 = vdwg.mxu0
    %v187 = vadd.f32 %v99, %v179
    %v188 = vadd.f32 %v100, %v184
    %189 = vst.msk [vmem:[#allocation2] sm:$0xff] %vm105, %v187
    %190 = vst.msk [vmem:[#allocation2 + $0x8] sm:$0xff] %vm105, %v188
    %v191 = vld [vmem:[#allocation3] sm:$0xff]
    %v192 = vld [vmem:[#allocation3 + $0x8] sm:$0xff]
    %v193 = vld [vmem:[#allocation10] sm:$0xff]
    %v194 = vld [vmem:[#allocation10 + $0x8] sm:$0xff]
    %v195 = vld [vmem:[#allocation10 + $0x10] sm:$0xff]
    %v196 = vld [vmem:[#allocation10 + $0x18] sm:$0xff]
    %197 = vmatprep.subr.mxu0 0.0
    %198 = vmatpush1.msra.mxu0 %v193
    %199 = vmatprep.subr.mxu0 0.0
    %200 = vmatpush1.msra.mxu0 %v194
    %201 = vmatprep.subr.mxu0 0.0
    %202 = vmatpush1.msra.mxu0 %v195
    %203 = vmatprep.subr.mxu0 0.0
    %204 = vmatpush1.msra.mxu0 %v196
    %205 = vmatprep.subr.mxu0 0.0
    %206 = vmatpush1.msra.mxu0 0.0
    %207 = vmatprep.subr.mxu0 0.0
    %208 = vmatpush1.msra.mxu0 0.0
    %209 = vmatprep.subr.mxu0 0.0
    %210 = vmatpush1.msra.mxu0 0.0
    %211 = vmatprep.subr.mxu0 0.0
    %212 = vmatpush1.msra.mxu0 0.0
    %213 = vmatprep.subr.mxu0 0.0
    %214 = vmatpush1.msra.mxu0 0.0
    %215 = vmatprep.subr.mxu0 0.0
    %216 = vmatpush1.msra.mxu0 0.0
    %217 = vmatprep.subr.mxu0 0.0
    %218 = vmatpush1.msra.mxu0 0.0
    %219 = vmatprep.subr.mxu0 0.0
    %220 = vmatpush1.msra.mxu0 0.0
    %221 = vmatprep.subr.mxu0 0.0
    %222 = vmatpush1.msra.mxu0 0.0
    %223 = vmatprep.subr.mxu0 0.0
    %224 = vmatpush1.msra.mxu0 0.0
    %225 = vmatprep.subr.mxu0 0.0
    %226 = vmatpush1.msra.mxu0 0.0
    %227 = vmatprep.subr.mxu0 0.0
    %228 = vmatpush1.msra.mxu0 0.0
    %229 = vmatprep.subr.mxu0 0.0
    %230 = vmatpush1.msra.mxu0 0.0
    %231 = vmatprep.subr.mxu0 0.0
    %232 = vmatpush1.msra.mxu0 0.0
    %233 = vmatprep.subr.mxu0 0.0
    %234 = vmatpush1.msra.mxu0 0.0
    %235 = vmatprep.subr.mxu0 0.0
    %236 = vmatpush1.msra.mxu0 0.0
    %237 = vmatprep.subr.mxu0 0.0
    %238 = vmatpush1.msra.mxu0 0.0
    %239 = vmatprep.subr.mxu0 0.0
    %240 = vmatpush1.msra.mxu0 0.0
    %241 = vmatprep.subr.mxu0 0.0
    %242 = vmatpush1.msra.mxu0 0.0
    %243 = vmatprep.subr.mxu0 0.0
    %244 = vmatpush1.msra.mxu0 0.0
    %245 = vmatprep.subr.mxu0 0.0
    %246 = vmatpush1.msra.mxu0 0.0
    %247 = vmatprep.subr.mxu0 0.0
    %248 = vmatpush1.msra.mxu0 0.0
    %249 = vmatprep.subr.mxu0 0.0
    %250 = vmatpush1.msra.mxu0 0.0
    %251 = vmatprep.subr.mxu0 0.0
    %252 = vmatpush1.msra.mxu0 0.0
    %253 = vmatprep.subr.mxu0 0.0
    %254 = vmatpush1.msra.mxu0 0.0
    %255 = vmatprep.subr.mxu0 0.0
    %256 = vmatpush1.msra.mxu0 0.0
    %257 = vmatprep.subr.mxu0 0.0
    %258 = vmatpush1.msra.mxu0 0.0
    %259 = vmatprep.subr.mxu0 0.0
    %260 = vmatpush1.msra.mxu0 0.0
    %261 = vmatprep.mubr.f32.mxu0 0.0
    %262 = vmatmul.mubr.f32.gmra.mrb[0].mxu0 %v107
    %v263 = vpop.f32.mrb[0].mxu0
    %v264 = vadd.f32 0.0, %v263
    %v265 = vpop.f32.mrb[0].mxu0
    %266 = vmatprep.mubr.f32.mxu0 0.0
    %267 = vmatmul.mubr.f32.gmra.mrb[0].mxu0 %v110
    %v268 = vpop.f32.mrb[0].mxu0
    %v269 = vadd.f32 0.0, %v268
    %v270 = vpop.f32.mrb[0].mxu0
    %271 = vdwg.mxu0
    %v272 = vadd.f32 %v191, %v264
    %v273 = vadd.f32 %v192, %v269
    %274 = vst.msk [vmem:[#allocation3] sm:$0xff] %vm105, %v272
    %275 = vst.msk [vmem:[#allocation3 + $0x8] sm:$0xff] %vm105, %v273
    %v276 = vld [vmem:[#allocation4] sm:$0xff]
    %v277 = vld [vmem:[#allocation4 + $0x8] sm:$0xff]
    %v278 = vld [vmem:[#allocation11] sm:$0xff]
    %v279 = vld [vmem:[#allocation11 + $0x8] sm:$0xff]
    %v280 = vld [vmem:[#allocation11 + $0x10] sm:$0xff]
    %v281 = vld [vmem:[#allocation11 + $0x18] sm:$0xff]
    %282 = vmatprep.subr.mxu0 0.0
    %283 = vmatpush1.msra.mxu0 %v278
    %284 = vmatprep.subr.mxu0 0.0
    %285 = vmatpush1.msra.mxu0 %v279
    %286 = vmatprep.subr.mxu0 0.0
    %287 = vmatpush1.msra.mxu0 %v280
    %288 = vmatprep.subr.mxu0 0.0
    %289 = vmatpush1.msra.mxu0 %v281
    %290 = vmatprep.subr.mxu0 0.0
    %291 = vmatpush1.msra.mxu0 0.0
    %292 = vmatprep.subr.mxu0 0.0
    %293 = vmatpush1.msra.mxu0 0.0
    %294 = vmatprep.subr.mxu0 0.0
    %295 = vmatpush1.msra.mxu0 0.0
    %296 = vmatprep.subr.mxu0 0.0
    %297 = vmatpush1.msra.mxu0 0.0
    %298 = vmatprep.subr.mxu0 0.0
    %299 = vmatpush1.msra.mxu0 0.0
    %300 = vmatprep.subr.mxu0 0.0
    %301 = vmatpush1.msra.mxu0 0.0
    %302 = vmatprep.subr.mxu0 0.0
    %303 = vmatpush1.msra.mxu0 0.0
    %304 = vmatprep.subr.mxu0 0.0
    %305 = vmatpush1.msra.mxu0 0.0
    %306 = vmatprep.subr.mxu0 0.0
    %307 = vmatpush1.msra.mxu0 0.0
    %308 = vmatprep.subr.mxu0 0.0
    %309 = vmatpush1.msra.mxu0 0.0
    %310 = vmatprep.subr.mxu0 0.0
    %311 = vmatpush1.msra.mxu0 0.0
    %312 = vmatprep.subr.mxu0 0.0
    %313 = vmatpush1.msra.mxu0 0.0
    %314 = vmatprep.subr.mxu0 0.0
    %315 = vmatpush1.msra.mxu0 0.0
    %316 = vmatprep.subr.mxu0 0.0
    %317 = vmatpush1.msra.mxu0 0.0
    %318 = vmatprep.subr.mxu0 0.0
    %319 = vmatpush1.msra.mxu0 0.0
    %320 = vmatprep.subr.mxu0 0.0
    %321 = vmatpush1.msra.mxu0 0.0
    %322 = vmatprep.subr.mxu0 0.0
    %323 = vmatpush1.msra.mxu0 0.0
    %324 = vmatprep.subr.mxu0 0.0
    %325 = vmatpush1.msra.mxu0 0.0
    %326 = vmatprep.subr.mxu0 0.0
    %327 = vmatpush1.msra.mxu0 0.0
    %328 = vmatprep.subr.mxu0 0.0
    %329 = vmatpush1.msra.mxu0 0.0
    %330 = vmatprep.subr.mxu0 0.0
    %331 = vmatpush1.msra.mxu0 0.0
    %332 = vmatprep.subr.mxu0 0.0
    %333 = vmatpush1.msra.mxu0 0.0
    %334 = vmatprep.subr.mxu0 0.0
    %335 = vmatpush1.msra.mxu0 0.0
    %336 = vmatprep.subr.mxu0 0.0
    %337 = vmatpush1.msra.mxu0 0.0
    %338 = vmatprep.subr.mxu0 0.0
    %339 = vmatpush1.msra.mxu0 0.0
    %340 = vmatprep.subr.mxu0 0.0
    %341 = vmatpush1.msra.mxu0 0.0
    %342 = vmatprep.subr.mxu0 0.0
    %343 = vmatpush1.msra.mxu0 0.0
    %344 = vmatprep.subr.mxu0 0.0
    %345 = vmatpush1.msra.mxu0 0.0
    %346 = vmatprep.mubr.f32.mxu0 0.0
    %347 = vmatmul.mubr.f32.gmra.mrb[0].mxu0 %v107
    %v348 = vpop.f32.mrb[0].mxu0
    %v349 = vadd.f32 0.0, %v348
    %v350 = vpop.f32.mrb[0].mxu0
    %351 = vmatprep.mubr.f32.mxu0 0.0
    %352 = vmatmul.mubr.f32.gmra.mrb[0].mxu0 %v110
    %v353 = vpop.f32.mrb[0].mxu0
    %v354 = vadd.f32 0.0, %v353
    %v355 = vpop.f32.mrb[0].mxu0
    %356 = vdwg.mxu0
    %v357 = vadd.f32 %v276, %v349
    %v358 = vadd.f32 %v277, %v354
    %359 = vst.msk [vmem:[#allocation4] sm:$0xff] %vm105, %v357
    %360 = vst.msk [vmem:[#allocation4 + $0x8] sm:$0xff] %vm105, %v358
    // Predicated region
    $region50: #{tpu_custom_call.1} parent=1 // pred_check
      %p361 = pneg %p86
    $region51: #{tpu_custom_call.1} parent=1 // pred_check_branch
      %363 = sbr.rel (%p361) target = $region53
    $region52: #{tpu_custom_call.1} parent=1 // pred_region
      %v364 = vld [vmem:[#allocation2] sm:$0xff]
      %v365 = vld [vmem:[#allocation2 + $0x8] sm:$0xff]
      %v366 = vld [vmem:[%s4] sm:$0x1]
      %v368 = vlaneseq
      %v369 = vshrl.u32 %v368, 7
      %v370 = vsub.s32 0, %v369
      %v371 = vrot.slane %v366, %v370
      %v373 = vadd.f32 %v364, %v371
      %v374 = vadd.f32 %v365, %v371
      %v375 = vmax.f32 %v373, 0.0
      %v376 = vmax.f32 %v374, 0.0
      %377 = vst.msk [vmem:[#allocation13] sm:$0xff] %vm105, %v375
      %378 = vst.msk [vmem:[#allocation13 + $0x8] sm:$0xff] %vm105, %v376
      %v379 = vld [vmem:[#allocation3] sm:$0xff]
      %v380 = vld [vmem:[#allocation3 + $0x8] sm:$0xff]
      %v381 = vld [vmem:[%s5] sm:$0x1]
      %v383 = vlaneseq
      %v384 = vshrl.u32 %v383, 7
      %v385 = vsub.s32 0, %v384
      %v386 = vrot.slane %v381, %v385
      %v388 = vadd.f32 %v379, %v386
      %v389 = vadd.f32 %v380, %v386
      %v390 = vmax.f32 %v388, 0.0
      %v391 = vmax.f32 %v389, 0.0
      %392 = vst.msk [vmem:[#allocation14] sm:$0xff] %vm105, %v390
      %393 = vst.msk [vmem:[#allocation14 + $0x8] sm:$0xff] %vm105, %v391
      %v394 = vld [vmem:[#allocation4] sm:$0xff]
      %v395 = vld [vmem:[#allocation4 + $0x8] sm:$0xff]
      %v396 = vld [vmem:[%s6] sm:$0x1]
      %v398 = vlaneseq
      %v399 = vshrl.u32 %v398, 7
      %v400 = vsub.s32 0, %v399
      %v401 = vrot.slane %v396, %v400
      %v403 = vadd.f32 %v394, %v401
      %v404 = vadd.f32 %v395, %v401
      %v405 = vmax.f32 %v403, 0.0
      %v406 = vmax.f32 %v404, 0.0
      %407 = vst.msk [vmem:[#allocation16] sm:$0xff] %vm105, %v405
      %408 = vst.msk [vmem:[#allocation16 + $0x8] sm:$0xff] %vm105, %v406
    $region53: #{tpu_custom_call.1} parent=1 // pred_fallthru
      _
    // Predicated region
    $region54: #{tpu_custom_call.1} parent=1 // pred_check
      _
    $region55: #{tpu_custom_call.1} parent=1 // pred_check_branch
      %410 = sbr.rel (0) target = $region57
    $region56: #{tpu_custom_call.1} parent=1 // pred_region
      %s412 = ssub.s32 256, 256
      %413 = vsyncadd [#allocation7], %s412
      %s414 = sshll.u32 [#allocation13], 4
      %s415 = int_to_ptr.vmem [resolvable:$true] %s414
      %420 = dma.vmem_to_hbm [thread:$0]  %s415, 256, %s7, [#allocation7], 128, 128, 8
    $region57: #{tpu_custom_call.1} parent=1 // pred_fallthru
      _
    // Predicated region
    $region58: #{tpu_custom_call.1} parent=1 // pred_check
      _
    $region59: #{tpu_custom_call.1} parent=1 // pred_check_branch
      %422 = sbr.rel (0) target = $region61
    $region60: #{tpu_custom_call.1} parent=1 // pred_region
      %s424 = ssub.s32 256, 256
      %425 = vsyncadd [#allocation15], %s424
      %s426 = sshll.u32 [#allocation14], 4
      %s427 = int_to_ptr.vmem [resolvable:$true] %s426
      %432 = dma.vmem_to_hbm [thread:$0]  %s427, 256, %s8, [#allocation15], 128, 128, 8
    $region61: #{tpu_custom_call.1} parent=1 // pred_fallthru
      _
    // Predicated region
    $region62: #{tpu_custom_call.1} parent=1 // pred_check
      _
    $region63: #{tpu_custom_call.1} parent=1 // pred_check_branch
      %434 = sbr.rel (0) target = $region65
    $region64: #{tpu_custom_call.1} parent=1 // pred_region
      %s436 = ssub.s32 256, 256
      %437 = vsyncadd [#allocation15], %s436
      %s438 = sshll.u32 [#allocation16], 4
      %s439 = int_to_ptr.vmem [resolvable:$true] %s438
      %444 = dma.vmem_to_hbm [thread:$0]  %s439, 256, %s9, [#allocation15], 128, 128, 8
    $region65: #{tpu_custom_call.1} parent=1 // pred_fallthru
      _
    // Predicated region
    $region66: #{tpu_custom_call.1} parent=1 // pred_check
      _
    $region67: #{tpu_custom_call.1} parent=1 // pred_check_branch
      %446 = sbr.rel (0) target = $region69
    $region68: #{tpu_custom_call.1} parent=1 // pred_region
      %447 = dma.done [#allocation7], 256
    $region69: #{tpu_custom_call.1} parent=1 // pred_fallthru
      _
    // Predicated region
    $region70: #{tpu_custom_call.1} parent=1 // pred_check
      _
    $region71: #{tpu_custom_call.1} parent=1 // pred_check_branch
      %449 = sbr.rel (0) target = $region73
    $region72: #{tpu_custom_call.1} parent=1 // pred_region
      %450 = dma.done [#allocation15], 256
    $region73: #{tpu_custom_call.1} parent=1 // pred_fallthru
      _
    // Predicated region
    $region74: #{tpu_custom_call.1} parent=1 // pred_check
      _
    $region75: #{tpu_custom_call.1} parent=1 // pred_check_branch
      %452 = sbr.rel (0) target = $region77
    $region76: #{tpu_custom_call.1} parent=1 // pred_region
      %453 = dma.done [#allocation15], 256
    $region77: #{tpu_custom_call.1} parent=1 // pred_fallthru
      _
    %454 = vsyncpa [#allocation6], 1
    %455 = vsyncpa [#allocation9], 1
    %456 = vsyncpa [#allocation12], 1
    %457 = vsyncpa [#allocation7], 1
    %458 = vsyncpa [#allocation15], 1

</llo_original>
